<compile_context>
chip_gen: v6e
topology: v6e:2x2x1
jax: 0.10.0
libtpu: 0.0.40
codegen_flags: <defaults>
</compile_context>

<pallas_src>
import functools

import jax
import jax.numpy as jnp
from jax import lax
from jax.experimental import pallas as pl
from jax.experimental.pallas import tpu as pltpu


# Feature columns the PyTorch module selects: [:4] ++ [7:16] ++ [17:20] -> 16.
_SEL = tuple(range(4)) + tuple(range(7, 16)) + tuple(range(17, 20))


def _round_up(v, m):
    return (v + m - 1) // m * m


def _mlp_kernel(x_ref, w0_ref, b0_ref, wh_ref, bh_ref, wo_t_ref, bo_ref, o_ref,
                *, num_hidden_layers):
    """One row-tile: (TM,F)@(F,H) -> relu -> [(H,H) relu]*L -> lane-dense (1,TM) head."""
    # First layer: Linear(F -> H) + ReLU.  The feature selection is baked into
    # w0 (unused feature rows are zero), so x comes in its native layout.
    h = jnp.dot(x_ref[...], w0_ref[...], preferred_element_type=jnp.float32)
    h = jnp.maximum(h + b0_ref[...], 0.0)

    # Hidden layers: Linear(H -> H) + ReLU, statically unrolled.
    for l in range(num_hidden_layers):
        h = jnp.dot(h, wh_ref[l], preferred_element_type=jnp.float32)
        h = jnp.maximum(h + bh_ref[l], 0.0)

    # Output head, lane-dense: (1,H) . (TM,H)^T -> (1,TM).  Contracting dims
    # ((1,),(1,)) is the standard "A @ B^T" MXU pattern (no explicit transpose).
    out_row = lax.dot_general(
        wo_t_ref[...], h,
        dimension_numbers=(((1,), (1,)), ((), ())),
        preferred_element_type=jnp.float32)
    o_ref[...] = (out_row + bo_ref[...]).astype(o_ref.dtype)


def mlp_feature_extractor(x, params, *, num_debiasing_layers, tile_m=512):
    """x: (B, S, F) with F >= 20.  Returns prm_error_bias of shape (B, S, 1)."""
    B, S, F = x.shape
    assert F >= 20, "forward slices features up to index 19"
    w0, b0, wh, bh, wo, bo = params
    H = w0.shape[1]
    L1 = num_debiasing_layers - 1        # number of hidden (H->H) layers
    L1m = max(L1, 1)                     # dummy (1,H,H) block when L1 == 0

    # Fold the feature-slice concat into W0: scatter its 16 rows into a
    # zero-padded (F, H) matrix (rows 4,5,6,16,... stay zero).
    sel = jnp.asarray(_SEL, dtype=jnp.int32)
    w0_full = jnp.zeros((F, H), jnp.float32).at[sel].set(w0.astype(jnp.float32))
    wo_t = wo.astype(jnp.float32).reshape(1, H)          # (H,1) -> (1,H)

    # Row tiling: big tiles amortize per-step overhead; pad M up to a multiple.
    M = B * S
    if tile_m >= M:
        tile_m_eff = _round_up(M, 8)                     # single grid step
    else:
        tile_m_eff = _round_up(tile_m, 128)              # lane-dense out blocks
    M_pad = _round_up(M, tile_m_eff)
    grid = M_pad // tile_m_eff

    x2d = x.reshape(M, F).astype(jnp.float32)
    if M_pad != M:
        x2d = jnp.pad(x2d, ((0, M_pad - M), (0, 0)))

    flops = 2 * M_pad * (F * H + L1 * H * H + H)
    bytes_accessed = 4 * (M_pad * F + M_pad + int(w0_full.size) + int(b0.size)
                          + int(wh.size) + int(bh.size) + int(wo_t.size)
                          + int(bo.size))

    kernel = functools.partial(_mlp_kernel, num_hidden_layers=L1)

    out_row = pl.pallas_call(
        kernel,
        out_shape=jax.ShapeDtypeStruct((1, M_pad), jnp.float32),
        grid_spec=pltpu.PrefetchScalarGridSpec(
            num_scalar_prefetch=0,
            grid=(grid,),
            in_specs=[
                pl.BlockSpec((tile_m_eff, F), lambda i: (i, 0)),   # activations
                pl.BlockSpec((F, H), lambda i: (0, 0)),            # w0 (padded rows)
                pl.BlockSpec((1, H), lambda i: (0, 0)),            # b0
                pl.BlockSpec((L1m, H, H), lambda i: (0, 0, 0)),    # hidden W stack
                pl.BlockSpec((L1m, 1, H), lambda i: (0, 0, 0)),    # hidden b stack
                pl.BlockSpec((1, H), lambda i: (0, 0)),            # wo^T
                pl.BlockSpec((1, 1), lambda i: (0, 0)),            # bo
            ],
            out_specs=pl.BlockSpec((1, tile_m_eff), lambda i: (0, i)),
        ),
        compiler_params=pltpu.CompilerParams(
            dimension_semantics=("parallel",)),
        cost_estimate=pl.CostEstimate(
            flops=flops, transcendentals=0, bytes_accessed=bytes_accessed),
    )(x2d, w0_full, b0.astype(jnp.float32), wh.astype(jnp.float32),
      bh.astype(jnp.float32), wo_t, bo.astype(jnp.float32))

    return out_row[0, :M].reshape(B, S, 1)


def init_params(key, input_size_debiasing, num_hiddens_debiasing,
                num_debiasing_layers):
    """Deterministic synthetic parameter init (shapes match the nn.Module)."""
    H = num_hiddens_debiasing
    L1 = max(num_debiasing_layers - 1, 1)
    k0, k1, k2, k3, k4, k5 = jax.random.split(key, 6)
    scale0 = 1.0 / jnp.sqrt(input_size_debiasing)
    scaleh = 1.0 / jnp.sqrt(H)
    w0 = jax.random.uniform(k0, (input_size_debiasing, H), jnp.float32,
                            -scale0, scale0)
    b0 = jax.random.uniform(k1, (1, H), jnp.float32, -scale0, scale0)
    wh = jax.random.uniform(k2, (L1, H, H), jnp.float32, -scaleh, scaleh)
    bh = jax.random.uniform(k3, (L1, 1, H), jnp.float32, -scaleh, scaleh)
    wo = jax.random.uniform(k4, (H, 1), jnp.float32, -scaleh, scaleh)
    bo = jax.random.uniform(k5, (1, 1), jnp.float32, -scaleh, scaleh)
    return (w0, b0, wh, bh, wo, bo)


def reference_forward(x, params, num_debiasing_layers):
    """Pure-JAX reference mirroring the PyTorch forward."""
    w0, b0, wh, bh, wo, bo = params
    x_sel = jnp.concatenate(
        [x[:, :, :4], x[:, :, 7:16], x[:, :, 17:20]], axis=-1)
    h = jnp.maximum(x_sel @ w0 + b0[0], 0.0)
    for l in range(num_debiasing_layers - 1):
        h = jnp.maximum(h @ wh[l] + bh[l, 0], 0.0)
    return h @ wo + bo[0]


if __name__ == "__main__":
    # Small shapes consistent with the forward: features F=20 (slices reach
    # index 19), input_size_debiasing = 16, hidden = 32, 3 debiasing layers.
    B, S, F = 2, 8, 20
    input_size_debiasing = 16
    num_hiddens_debiasing = 32
    num_debiasing_layers = 3

    key = jax.random.PRNGKey(0)
    kx, kp, kx2 = jax.random.split(key, 3)
    x = jax.random.normal(kx, (B, S, F), dtype=jnp.float32)
    params = init_params(kp, input_size_debiasing, num_hiddens_debiasing,
                         num_debiasing_layers)

    out = mlp_feature_extractor(
        x, params, num_debiasing_layers=num_debiasing_layers)
    out = jax.block_until_ready(out)
    ref = reference_forward(x, params, num_debiasing_layers)
    assert out.shape == (B, S, 1), out.shape
    assert jnp.allclose(out, ref, atol=1e-5, rtol=1e-5), \
        float(jnp.max(jnp.abs(out - ref)))

    # Larger shape: exercises multi-tile grid + row padding
    # (M = 3*350 = 1050 rows -> padded to 1536 = 3 tiles of 512).
    B2, S2 = 3, 350
    x2 = jax.random.normal(kx2, (B2, S2, F), dtype=jnp.float32)
    out2 = jax.block_until_ready(
        mlp_feature_extractor(x2, params,
                              num_debiasing_layers=num_debiasing_layers,
                              tile_m=512))
    ref2 = reference_forward(x2, params, num_debiasing_layers)
    assert out2.shape == (B2, S2, 1), out2.shape
    assert jnp.allclose(out2, ref2, atol=1e-4, rtol=1e-4), \
        float(jnp.max(jnp.abs(out2 - ref2)))

    print("KERNEL_OK")
</pallas_src>

<mosaic_0001>
module attributes {stable_mosaic.version = 11 : i64} {
  func.func @_mlp_kernel(%arg0: i32, %arg1: memref<16x20xf32, #tpu.memory_space<vmem>>, %arg2: memref<20x32xf32, #tpu.memory_space<vmem>>, %arg3: memref<1x32xf32, #tpu.memory_space<vmem>>, %arg4: memref<2x32x32xf32, #tpu.memory_space<vmem>>, %arg5: memref<2x1x32xf32, #tpu.memory_space<vmem>>, %arg6: memref<1x32xf32, #tpu.memory_space<vmem>>, %arg7: memref<1x1xf32, #tpu.memory_space<vmem>>, %arg8: memref<1x16xf32, #tpu.memory_space<vmem>>) attributes {dimension_semantics = [#tpu.dimension_semantics<parallel>], iteration_bounds = array<i64: 1>, scalar_prefetch = 0 : i64, scratch_operands = 0 : i64, tpu.core_type = #tpu.core_type<tc>, window_params = [{transform_indices = @transform_0, window_bounds = array<i64: 16, 20>}, {pipeline_mode = #tpu.pipeline_mode<synchronous>, transform_indices = @transform_1, window_bounds = array<i64: 20, 32>}, {pipeline_mode = #tpu.pipeline_mode<synchronous>, transform_indices = @transform_2, window_bounds = array<i64: 1, 32>}, {pipeline_mode = #tpu.pipeline_mode<synchronous>, transform_indices = @transform_3, window_bounds = array<i64: 2, 32, 32>}, {pipeline_mode = #tpu.pipeline_mode<synchronous>, transform_indices = @transform_4, window_bounds = array<i64: 2, 1, 32>}, {pipeline_mode = #tpu.pipeline_mode<synchronous>, transform_indices = @transform_5, window_bounds = array<i64: 1, 32>}, {pipeline_mode = #tpu.pipeline_mode<synchronous>, transform_indices = @transform_6, window_bounds = array<i64: 1, 1>}, {transform_indices = @transform_7, window_bounds = array<i64: 1, 16>}]} {
    %c0 = arith.constant 0 : index
    %c0_0 = arith.constant 0 : index
    %0 = vector.load %arg1[%c0, %c0_0] : memref<16x20xf32, #tpu.memory_space<vmem>>, vector<16x20xf32>
    %c0_1 = arith.constant 0 : index
    %c0_2 = arith.constant 0 : index
    %1 = vector.load %arg2[%c0_1, %c0_2] : memref<20x32xf32, #tpu.memory_space<vmem>>, vector<20x32xf32>
    %cst = arith.constant dense<0.000000e+00> : vector<16x32xf32>
    %2 = tpu.matmul %0, %1, %cst {dimension_numbers = #tpu.dot_dimension_numbers<[1], [0], [0], [1], [0, 0, 1, 1], [], []>} : vector<16x20xf32>, vector<20x32xf32>, vector<16x32xf32> -> vector<16x32xf32>
    %c0_3 = arith.constant 0 : index
    %c0_4 = arith.constant 0 : index
    %3 = vector.load %arg3[%c0_3, %c0_4] : memref<1x32xf32, #tpu.memory_space<vmem>>, vector<1x32xf32>
    %4 = vector.broadcast %3 : vector<1x32xf32> to vector<16x32xf32>
    %5 = arith.addf %2, %4 : vector<16x32xf32>
    %cst_5 = arith.constant 0.000000e+00 : f32
    %6 = vector.broadcast %cst_5 : f32 to vector<16x32xf32>
    %7 = arith.maximumf %5, %6 : vector<16x32xf32>
    %c0_6 = arith.constant 0 : index
    %c0_7 = arith.constant 0 : index
    %c0_8 = arith.constant 0 : index
    %8 = vector.load %arg4[%c0_6, %c0_7, %c0_8] : memref<2x32x32xf32, #tpu.memory_space<vmem>>, vector<1x32x32xf32>
    %9 = vector.shape_cast %8 : vector<1x32x32xf32> to vector<32x32xf32>
    %cst_9 = arith.constant dense<0.000000e+00> : vector<16x32xf32>
    %10 = tpu.matmul %7, %9, %cst_9 {dimension_numbers = #tpu.dot_dimension_numbers<[1], [0], [0], [1], [0, 0, 1, 1], [], []>} : vector<16x32xf32>, vector<32x32xf32>, vector<16x32xf32> -> vector<16x32xf32>
    %c0_10 = arith.constant 0 : index
    %c0_11 = arith.constant 0 : index
    %c0_12 = arith.constant 0 : index
    %11 = vector.load %arg5[%c0_10, %c0_11, %c0_12] : memref<2x1x32xf32, #tpu.memory_space<vmem>>, vector<1x1x32xf32>
    %12 = vector.shape_cast %11 : vector<1x1x32xf32> to vector<1x32xf32>
    %13 = vector.broadcast %12 : vector<1x32xf32> to vector<16x32xf32>
    %14 = arith.addf %10, %13 : vector<16x32xf32>
    %cst_13 = arith.constant 0.000000e+00 : f32
    %15 = vector.broadcast %cst_13 : f32 to vector<16x32xf32>
    %16 = arith.maximumf %14, %15 : vector<16x32xf32>
    %c1 = arith.constant 1 : index
    %c0_14 = arith.constant 0 : index
    %c0_15 = arith.constant 0 : index
    %17 = vector.load %arg4[%c1, %c0_14, %c0_15] : memref<2x32x32xf32, #tpu.memory_space<vmem>>, vector<1x32x32xf32>
    %18 = vector.shape_cast %17 : vector<1x32x32xf32> to vector<32x32xf32>
    %cst_16 = arith.constant dense<0.000000e+00> : vector<16x32xf32>
    %19 = tpu.matmul %16, %18, %cst_16 {dimension_numbers = #tpu.dot_dimension_numbers<[1], [0], [0], [1], [0, 0, 1, 1], [], []>} : vector<16x32xf32>, vector<32x32xf32>, vector<16x32xf32> -> vector<16x32xf32>
    %c1_17 = arith.constant 1 : index
    %c0_18 = arith.constant 0 : index
    %c0_19 = arith.constant 0 : index
    %20 = vector.load %arg5[%c1_17, %c0_18, %c0_19] : memref<2x1x32xf32, #tpu.memory_space<vmem>>, vector<1x1x32xf32>
    %21 = vector.shape_cast %20 : vector<1x1x32xf32> to vector<1x32xf32>
    %22 = vector.broadcast %21 : vector<1x32xf32> to vector<16x32xf32>
    %23 = arith.addf %19, %22 : vector<16x32xf32>
    %cst_20 = arith.constant 0.000000e+00 : f32
    %24 = vector.broadcast %cst_20 : f32 to vector<16x32xf32>
    %25 = arith.maximumf %23, %24 : vector<16x32xf32>
    %c0_21 = arith.constant 0 : index
    %c0_22 = arith.constant 0 : index
    %26 = vector.load %arg6[%c0_21, %c0_22] : memref<1x32xf32, #tpu.memory_space<vmem>>, vector<1x32xf32>
    %cst_23 = arith.constant dense<0.000000e+00> : vector<1x16xf32>
    %27 = tpu.matmul %26, %25, %cst_23 {dimension_numbers = #tpu.dot_dimension_numbers<[1], [1], [0], [0], [0, 0, 1, 0], [], []>} : vector<1x32xf32>, vector<16x32xf32>, vector<1x16xf32> -> vector<1x16xf32>
    %c0_24 = arith.constant 0 : index
    %c0_25 = arith.constant 0 : index
    %28 = vector.load %arg7[%c0_24, %c0_25] : memref<1x1xf32, #tpu.memory_space<vmem>>, vector<1x1xf32>
    %29 = vector.broadcast %28 : vector<1x1xf32> to vector<1x16xf32>
    %30 = arith.addf %27, %29 : vector<1x16xf32>
    %c0_26 = arith.constant 0 : index
    %c0_27 = arith.constant 0 : index
    %31 = vector.load %arg8[%c0_26, %c0_27] : memref<1x16xf32, #tpu.memory_space<vmem>>, vector<1x16xf32>
    tpu.vector_store %arg8[%c0_26, %c0_27], %30 {strides = array<i32>} : memref<1x16xf32, #tpu.memory_space<vmem>>, vector<1x16xf32>,
    return
  }
  func.func @transform_0(%arg0: i32) -> (i32, i32) {
    %c0_i32 = arith.constant 0 : i32
    %c0_i32_0 = arith.constant 0 : i32
    return %arg0, %c0_i32 : i32, i32
  }
  func.func @transform_1(%arg0: i32) -> (i32, i32) {
    %c0_i32 = arith.constant 0 : i32
    %c0_i32_0 = arith.constant 0 : i32
    %c0_i32_1 = arith.constant 0 : i32
    return %c0_i32, %c0_i32_0 : i32, i32
  }
  func.func @transform_2(%arg0: i32) -> (i32, i32) {
    %c0_i32 = arith.constant 0 : i32
    %c0_i32_0 = arith.constant 0 : i32
    %c0_i32_1 = arith.constant 0 : i32
    return %c0_i32, %c0_i32_0 : i32, i32
  }
  func.func @transform_3(%arg0: i32) -> (i32, i32, i32) {
    %c0_i32 = arith.constant 0 : i32
    %c0_i32_0 = arith.constant 0 : i32
    %c0_i32_1 = arith.constant 0 : i32
    %c0_i32_2 = arith.constant 0 : i32
    return %c0_i32, %c0_i32_0, %c0_i32_1 : i32, i32, i32
  }
  func.func @transform_4(%arg0: i32) -> (i32, i32, i32) {
    %c0_i32 = arith.constant 0 : i32
    %c0_i32_0 = arith.constant 0 : i32
    %c0_i32_1 = arith.constant 0 : i32
    %c0_i32_2 = arith.constant 0 : i32
    return %c0_i32, %c0_i32_0, %c0_i32_1 : i32, i32, i32
  }
  func.func @transform_5(%arg0: i32) -> (i32, i32) {
    %c0_i32 = arith.constant 0 : i32
    %c0_i32_0 = arith.constant 0 : i32
    %c0_i32_1 = arith.constant 0 : i32
    return %c0_i32, %c0_i32_0 : i32, i32
  }
  func.func @transform_6(%arg0: i32) -> (i32, i32) {
    %c0_i32 = arith.constant 0 : i32
    %c0_i32_0 = arith.constant 0 : i32
    %c0_i32_1 = arith.constant 0 : i32
    return %c0_i32, %c0_i32_0 : i32, i32
  }
  func.func @transform_7(%arg0: i32) -> (i32, i32) {
    %c0_i32 = arith.constant 0 : i32
    %c0_i32_0 = arith.constant 0 : i32
    return %c0_i32, %arg0 : i32, i32
  }
}

</mosaic_0001>

<llo_original>
// kernel: tpu_custom_call.1
$region0: #{tpu_custom_call.1}
  #allocation0 [shape = 'u32[]', space=smem, size = 0x4, offset = 0x4, fixed_abs, tag = 'smem constant byte address 0x4 - core index']
  #allocation1 [shape = 'u32[144,128]{1,0:T(1,128)}', space=vmem, size = 0x12000, scoped, tag = 'internal scratch']
  #allocation2 [shape = 'f32[1,1]{1,0:T(1,128)S(1)}', space=vmem, size = 0x200, scoped, tag = 'scoped memory for tpu_custom_call.1']
  %s0 = inlined_call_operand.hbm [shape: f32[16,20], index: 0, kind: input, shape index: {}]
  %s1 = inlined_call_operand.hbm [shape: f32[20,32], index: 1, kind: input, shape index: {}]
  %s2 = inlined_call_operand.vmem [shape: f32[1,32], index: 2, kind: input, shape index: {}]
  %s3 = inlined_call_operand.hbm [shape: f32[2,32,32], index: 3, kind: input, shape index: {}]
  %s4 = inlined_call_operand.vmem [shape: f32[2,1,32], index: 4, kind: input, shape index: {}]
  %s5 = inlined_call_operand.vmem [shape: f32[1,32], index: 5, kind: input, shape index: {}]
  %s6 = inlined_call_operand.<no memory space> [shape: f32[1,1], index: 6, kind: input, shape index: {}]
  %s7 = inlined_call_operand.hbm [shape: f32[1,16], index: 7, kind: output, shape index: {}]
  %s8 = sld [smem:[#allocation0]]
  $region50: #{tpu_custom_call.1} parent=0
    _
  %s10 = ssub.s32 1, %s8
  %s11 = scalar_select 0, %s10, %s8
  %v12 = vstv %s6
  %13 = vst [vmem:[#allocation2] sm:$0x1] %v12
  $region1: #{tpu_custom_call.1} parent=0
    #allocation3 [shape = 'u8[8192]{0}', space=vmem, size = 0x2000, scoped, tag = 'input window, operand 0, single buffered']
    #allocation4 [shape = 's32[1]{0}', space=sflag, size = 0x4, scoped, tag = 'scoped memory for tpu_custom_call.1']
    #allocation5 [shape = 's32[1]{0}', space=sflag, size = 0x4, scoped, tag = 'scoped memory for tpu_custom_call.1']
    #allocation6 [shape = 'u8[12288]{0}', space=vmem, size = 0x3000, scoped, tag = 'input window, operand 1, single buffered']
    #allocation7 [shape = 's32[1]{0}', space=sflag, size = 0x4, scoped, tag = 'scoped memory for tpu_custom_call.1']
    #allocation8 [shape = 'u8[32768]{0}', space=vmem, size = 0x8000, scoped, tag = 'input window, operand 3, single buffered']
    #allocation9 [shape = 'u8[512]{0}', space=vmem, size = 0x400, scoped, tag = 'output window, operand 0, single buffered']
    %14 = vsyncpa [#allocation4], 0
    %15 = vsyncpa [#allocation7], 0
    %16 = vsyncpa [#allocation5], 0
    // Predicated region
    $region2: #{tpu_custom_call.1} parent=1 // pred_check
      _
    $region3: #{tpu_custom_call.1} parent=1 // pred_check_branch
      %18 = sbr.rel (0) target = $region5
    $region4: #{tpu_custom_call.1} parent=1 // pred_region
      %s20 = ssub.s32 256, 256
      %21 = vsyncadd [#allocation4], %s20
      %s22 = sshll.u32 [#allocation3], 4
      %s23 = int_to_ptr.vmem [resolvable:$true] %s22
      %28 = dma.hbm_to_vmem [thread:$0]  %s0, 256, %s23, [#allocation4], 128, 128, 8
    $region5: #{tpu_custom_call.1} parent=1 // pred_fallthru
      _
    // Predicated region
    $region6: #{tpu_custom_call.1} parent=1 // pred_check
      _
    $region7: #{tpu_custom_call.1} parent=1 // pred_check_branch
      %30 = sbr.rel (0) target = $region9
    $region8: #{tpu_custom_call.1} parent=1 // pred_region
      %s32 = ssub.s32 384, 384
      %33 = vsyncadd [#allocation7], %s32
      %s34 = sshll.u32 [#allocation6], 4
      %s35 = int_to_ptr.vmem [resolvable:$true] %s34
      %40 = dma.hbm_to_vmem [thread:$0]  %s1, 384, %s35, [#allocation7], 128, 128, 8
    $region9: #{tpu_custom_call.1} parent=1 // pred_fallthru
      _
    // Predicated region
    $region10: #{tpu_custom_call.1} parent=1 // pred_check
      _
    $region11: #{tpu_custom_call.1} parent=1 // pred_check_branch
      %42 = sbr.rel (0) target = $region13
    $region12: #{tpu_custom_call.1} parent=1 // pred_region
      _
    $region13: #{tpu_custom_call.1} parent=1 // pred_fallthru
      _
    // Predicated region
    $region14: #{tpu_custom_call.1} parent=1 // pred_check
      _
    $region15: #{tpu_custom_call.1} parent=1 // pred_check_branch
      %44 = sbr.rel (0) target = $region17
    $region16: #{tpu_custom_call.1} parent=1 // pred_region
      %s46 = ssub.s32 1024, 1024
      %47 = vsyncadd [#allocation7], %s46
      %s48 = sshll.u32 [#allocation8], 4
      %s49 = int_to_ptr.vmem [resolvable:$true] %s48
      %54 = dma.hbm_to_vmem [thread:$0]  %s3, 1024, %s49, [#allocation7], 128, 128, 8
    $region17: #{tpu_custom_call.1} parent=1 // pred_fallthru
      _
    // Predicated region
    $region18: #{tpu_custom_call.1} parent=1 // pred_check
      _
    $region19: #{tpu_custom_call.1} parent=1 // pred_check_branch
      %56 = sbr.rel (0) target = $region21
    $region20: #{tpu_custom_call.1} parent=1 // pred_region
      _
    $region21: #{tpu_custom_call.1} parent=1 // pred_fallthru
      _
    // Predicated region
    $region22: #{tpu_custom_call.1} parent=1 // pred_check
      _
    $region23: #{tpu_custom_call.1} parent=1 // pred_check_branch
      %58 = sbr.rel (0) target = $region25
    $region24: #{tpu_custom_call.1} parent=1 // pred_region
      _
    $region25: #{tpu_custom_call.1} parent=1 // pred_fallthru
      _
    // Predicated region
    $region26: #{tpu_custom_call.1} parent=1 // pred_check
      _
    $region27: #{tpu_custom_call.1} parent=1 // pred_check_branch
      %60 = sbr.rel (0) target = $region29
    $region28: #{tpu_custom_call.1} parent=1 // pred_region
      _
    $region29: #{tpu_custom_call.1} parent=1 // pred_fallthru
      _
    // Predicated region
    $region30: #{tpu_custom_call.1} parent=1 // pred_check
      _
    $region31: #{tpu_custom_call.1} parent=1 // pred_check_branch
      %62 = sbr.rel (0) target = $region33
    $region32: #{tpu_custom_call.1} parent=1 // pred_region
      %63 = dma.done [#allocation4], 256
    $region33: #{tpu_custom_call.1} parent=1 // pred_fallthru
      _
    // Predicated region
    $region34: #{tpu_custom_call.1} parent=1 // pred_check
      _
    $region35: #{tpu_custom_call.1} parent=1 // pred_check_branch
      %65 = sbr.rel (0) target = $region37
    $region36: #{tpu_custom_call.1} parent=1 // pred_region
      %66 = dma.done [#allocation7], 384
    $region37: #{tpu_custom_call.1} parent=1 // pred_fallthru
      _
    // Predicated region
    $region38: #{tpu_custom_call.1} parent=1 // pred_check
      _
    $region39: #{tpu_custom_call.1} parent=1 // pred_check_branch
      %68 = sbr.rel (0) target = $region41
    $region40: #{tpu_custom_call.1} parent=1 // pred_region
      %69 = dma.done [#allocation7], 1024
    $region41: #{tpu_custom_call.1} parent=1 // pred_fallthru
      _
    %v70 = vld [vmem:[#allocation3] sm:$0xff]
    %v71 = vld [vmem:[#allocation3 + $0x8] sm:$0xff]
    %v72 = vld [vmem:[#allocation6] sm:$0xff]
    %v73 = vld [vmem:[#allocation6 + $0x8] sm:$0xff]
    %v74 = vld [vmem:[#allocation6 + $0x10] sm:$0xf]
    %v75 = vld [vmem:[%s2] sm:$0x1]
    %v77 = vlaneseq
    %v78 = vshrl.u32 %v77, 7
    %v79 = vsub.s32 0, %v78
    %v80 = vrot.slane %v75, %v79
    %vm82 = vcmask 162816
    %v84 = vsel %vm82, %v70, 0
    %v87 = vsel %vm82, %v71, 0
    %vm89 = vcmask 1043456
    %v91 = vsel %vm89, %v74, 0
    %93 = vmatprep.subr.mxu0 0.0
    %94 = vmatpush1.msra.mxu0 0.0
    %95 = vmatprep.subr.mxu0 0.0
    %96 = vmatpush1.msra.mxu0 0.0
    %97 = vmatprep.subr.mxu0 0.0
    %98 = vmatpush1.msra.mxu0 0.0
    %99 = vmatprep.subr.mxu0 0.0
    %100 = vmatpush1.msra.mxu0 0.0
    %101 = vmatprep.subr.mxu0 0.0
    %102 = vmatpush1.msra.mxu0 0.0
    %103 = vmatprep.subr.mxu0 0.0
    %104 = vmatpush1.msra.mxu0 0.0
    %105 = vmatprep.subr.mxu0 0.0
    %106 = vmatpush1.msra.mxu0 0.0
    %107 = vmatprep.subr.mxu0 0.0
    %108 = vmatpush1.msra.mxu0 0.0
    %109 = vmatprep.subr.mxu0 0.0
    %110 = vmatpush1.msra.mxu0 0.0
    %111 = vmatprep.subr.mxu0 0.0
    %112 = vmatpush1.msra.mxu0 0.0
    %113 = vmatprep.subr.mxu0 0.0
    %114 = vmatpush1.msra.mxu0 0.0
    %115 = vmatprep.subr.mxu0 0.0
    %116 = vmatpush1.msra.mxu0 0.0
    %117 = vmatprep.subr.mxu0 0.0
    %118 = vmatpush1.msra.mxu0 0.0
    %119 = vmatprep.subr.mxu0 0.0
    %120 = vmatpush1.msra.mxu0 %v91
    %121 = vmatprep.subr.mxu0 0.0
    %122 = vmatpush1.msra.mxu0 %v73
    %123 = vmatprep.subr.mxu0 0.0
    %124 = vmatpush1.msra.mxu0 %v72
    %125 = vmatprep.subr.mxu0 0.0
    %126 = vmatpush2.msra.mxu0 0.0
    %127 = vmatprep.subr.mxu0 0.0
    %128 = vmatpush2.msra.mxu0 0.0
    %129 = vmatprep.subr.mxu0 0.0
    %130 = vmatpush2.msra.mxu0 0.0
    %131 = vmatprep.subr.mxu0 0.0
    %132 = vmatpush2.msra.mxu0 0.0
    %133 = vmatprep.subr.mxu0 0.0
    %134 = vmatpush2.msra.mxu0 0.0
    %135 = vmatprep.subr.mxu0 0.0
    %136 = vmatpush2.msra.mxu0 0.0
    %137 = vmatprep.subr.mxu0 0.0
    %138 = vmatpush2.msra.mxu0 0.0
    %139 = vmatprep.subr.mxu0 0.0
    %140 = vmatpush2.msra.mxu0 0.0
    %141 = vmatprep.subr.mxu0 0.0
    %142 = vmatpush2.msra.mxu0 0.0
    %143 = vmatprep.subr.mxu0 0.0
    %144 = vmatpush2.msra.mxu0 0.0
    %145 = vmatprep.subr.mxu0 0.0
    %146 = vmatpush2.msra.mxu0 0.0
    %147 = vmatprep.subr.mxu0 0.0
    %148 = vmatpush2.msra.mxu0 0.0
    %149 = vmatprep.subr.mxu0 0.0
    %150 = vmatpush2.msra.mxu0 0.0
    %151 = vmatprep.subr.mxu0 0.0
    %152 = vmatpush2.msra.mxu0 0.0
    %153 = vmatprep.subr.mxu0 0.0
    %154 = vmatpush2.msra.mxu0 0.0
    %155 = vmatprep.subr.mxu0 0.0
    %156 = vmatpush2.msra.mxu0 0.0
    %157 = vmatprep.mubr.f32.mxu0 0.0
    %158 = vmatmul.mubr.f32.gmra.mxu0 %v84
    %v159 = vpop.f32.mrf.mxu0
    %v160 = vadd.f32 %v80, %v159
    %v161 = vpop.f32.mrf.mxu0
    %162 = vmatprep.mubr.f32.mxu0 0.0
    %163 = vmatmul.mubr.f32.gmra.mxu0 %v87
    %v164 = vpop.f32.mrf.mxu0
    %v165 = vadd.f32 %v80, %v164
    %v166 = vpop.f32.mrf.mxu0
    %167 = vdwg.mxu0
    %v168 = vmax.f32 %v160, 0.0
    %v169 = vmax.f32 %v165, 0.0
    %v170 = vld [vmem:[#allocation8] sm:$0xff]
    %v171 = vld [vmem:[#allocation8 + $0x8] sm:$0xff]
    %v172 = vld [vmem:[#allocation8 + $0x10] sm:$0xff]
    %v173 = vld [vmem:[#allocation8 + $0x18] sm:$0xff]
    %v174 = vld [vmem:[%s4] sm:$0x1]
    %v176 = vlaneseq
    %v177 = vshrl.u32 %v176, 7
    %v178 = vsub.s32 0, %v177
    %v179 = vrot.slane %v174, %v178
    %vm181 = vcmask 261120
    %v183 = vsel %vm181, %v168, 0
    %v186 = vsel %vm181, %v169, 0
    %188 = vmatprep.subr.mxu0 0.0
    %189 = vmatpush1.msra.mxu0 0.0
    %190 = vmatprep.subr.mxu0 0.0
    %191 = vmatpush1.msra.mxu0 0.0
    %192 = vmatprep.subr.mxu0 0.0
    %193 = vmatpush1.msra.mxu0 0.0
    %194 = vmatprep.subr.mxu0 0.0
    %195 = vmatpush1.msra.mxu0 0.0
    %196 = vmatprep.subr.mxu0 0.0
    %197 = vmatpush1.msra.mxu0 0.0
    %198 = vmatprep.subr.mxu0 0.0
    %199 = vmatpush1.msra.mxu0 0.0
    %200 = vmatprep.subr.mxu0 0.0
    %201 = vmatpush1.msra.mxu0 0.0
    %202 = vmatprep.subr.mxu0 0.0
    %203 = vmatpush1.msra.mxu0 0.0
    %204 = vmatprep.subr.mxu0 0.0
    %205 = vmatpush1.msra.mxu0 0.0
    %206 = vmatprep.subr.mxu0 0.0
    %207 = vmatpush1.msra.mxu0 0.0
    %208 = vmatprep.subr.mxu0 0.0
    %209 = vmatpush1.msra.mxu0 0.0
    %210 = vmatprep.subr.mxu0 0.0
    %211 = vmatpush1.msra.mxu0 0.0
    %212 = vmatprep.subr.mxu0 0.0
    %213 = vmatpush1.msra.mxu0 %v173
    %214 = vmatprep.subr.mxu0 0.0
    %215 = vmatpush1.msra.mxu0 %v172
    %216 = vmatprep.subr.mxu0 0.0
    %217 = vmatpush1.msra.mxu0 %v171
    %218 = vmatprep.subr.mxu0 0.0
    %219 = vmatpush1.msra.mxu0 %v170
    %220 = vmatprep.subr.mxu0 0.0
    %221 = vmatpush2.msra.mxu0 0.0
    %222 = vmatprep.subr.mxu0 0.0
    %223 = vmatpush2.msra.mxu0 0.0
    %224 = vmatprep.subr.mxu0 0.0
    %225 = vmatpush2.msra.mxu0 0.0
    %226 = vmatprep.subr.mxu0 0.0
    %227 = vmatpush2.msra.mxu0 0.0
    %228 = vmatprep.subr.mxu0 0.0
    %229 = vmatpush2.msra.mxu0 0.0
    %230 = vmatprep.subr.mxu0 0.0
    %231 = vmatpush2.msra.mxu0 0.0
    %232 = vmatprep.subr.mxu0 0.0
    %233 = vmatpush2.msra.mxu0 0.0
    %234 = vmatprep.subr.mxu0 0.0
    %235 = vmatpush2.msra.mxu0 0.0
    %236 = vmatprep.subr.mxu0 0.0
    %237 = vmatpush2.msra.mxu0 0.0
    %238 = vmatprep.subr.mxu0 0.0
    %239 = vmatpush2.msra.mxu0 0.0
    %240 = vmatprep.subr.mxu0 0.0
    %241 = vmatpush2.msra.mxu0 0.0
    %242 = vmatprep.subr.mxu0 0.0
    %243 = vmatpush2.msra.mxu0 0.0
    %244 = vmatprep.subr.mxu0 0.0
    %245 = vmatpush2.msra.mxu0 0.0
    %246 = vmatprep.subr.mxu0 0.0
    %247 = vmatpush2.msra.mxu0 0.0
    %248 = vmatprep.subr.mxu0 0.0
    %249 = vmatpush2.msra.mxu0 0.0
    %250 = vmatprep.subr.mxu0 0.0
    %251 = vmatpush2.msra.mxu0 0.0
    %252 = vmatprep.mubr.f32.mxu0 0.0
    %253 = vmatmul.mubr.f32.gmra.mxu0 %v183
    %v254 = vpop.f32.mrf.mxu0
    %v255 = vadd.f32 %v179, %v254
    %v256 = vpop.f32.mrf.mxu0
    %257 = vmatprep.mubr.f32.mxu0 0.0
    %258 = vmatmul.mubr.f32.gmra.mxu0 %v186
    %v259 = vpop.f32.mrf.mxu0
    %v260 = vadd.f32 %v179, %v259
    %v261 = vpop.f32.mrf.mxu0
    %262 = vdwg.mxu0
    %v263 = vmax.f32 %v255, 0.0
    %v264 = vmax.f32 %v260, 0.0
    %s265 = scalar_lea.vmem [#allocation8], 32
    %v266 = vld [vmem:[%s265] sm:$0xff]
    %v267 = vld [vmem:[%s265 + $0x8] sm:$0xff]
    %v268 = vld [vmem:[%s265 + $0x10] sm:$0xff]
    %v269 = vld [vmem:[%s265 + $0x18] sm:$0xff]
    %s270 = scalar_lea.vmem %s4, 1
    %v271 = vld [vmem:[%s270] sm:$0x1]
    %v273 = vlaneseq
    %v274 = vshrl.u32 %v273, 7
    %v275 = vsub.s32 0, %v274
    %v276 = vrot.slane %v271, %v275
    %v279 = vsel %vm181, %v263, 0
    %v282 = vsel %vm181, %v264, 0
    %284 = vmatprep.subr.mxu0 0.0
    %285 = vmatpush1.msra.mxu0 0.0
    %286 = vmatprep.subr.mxu0 0.0
    %287 = vmatpush1.msra.mxu0 0.0
    %288 = vmatprep.subr.mxu0 0.0
    %289 = vmatpush1.msra.mxu0 0.0
    %290 = vmatprep.subr.mxu0 0.0
    %291 = vmatpush1.msra.mxu0 0.0
    %292 = vmatprep.subr.mxu0 0.0
    %293 = vmatpush1.msra.mxu0 0.0
    %294 = vmatprep.subr.mxu0 0.0
    %295 = vmatpush1.msra.mxu0 0.0
    %296 = vmatprep.subr.mxu0 0.0
    %297 = vmatpush1.msra.mxu0 0.0
    %298 = vmatprep.subr.mxu0 0.0
    %299 = vmatpush1.msra.mxu0 0.0
    %300 = vmatprep.subr.mxu0 0.0
    %301 = vmatpush1.msra.mxu0 0.0
    %302 = vmatprep.subr.mxu0 0.0
    %303 = vmatpush1.msra.mxu0 0.0
    %304 = vmatprep.subr.mxu0 0.0
    %305 = vmatpush1.msra.mxu0 0.0
    %306 = vmatprep.subr.mxu0 0.0
    %307 = vmatpush1.msra.mxu0 0.0
    %308 = vmatprep.subr.mxu0 0.0
    %309 = vmatpush1.msra.mxu0 %v269
    %310 = vmatprep.subr.mxu0 0.0
    %311 = vmatpush1.msra.mxu0 %v268
    %312 = vmatprep.subr.mxu0 0.0
    %313 = vmatpush1.msra.mxu0 %v267
    %314 = vmatprep.subr.mxu0 0.0
    %315 = vmatpush1.msra.mxu0 %v266
    %316 = vmatprep.subr.mxu0 0.0
    %317 = vmatpush2.msra.mxu0 0.0
    %318 = vmatprep.subr.mxu0 0.0
    %319 = vmatpush2.msra.mxu0 0.0
    %320 = vmatprep.subr.mxu0 0.0
    %321 = vmatpush2.msra.mxu0 0.0
    %322 = vmatprep.subr.mxu0 0.0
    %323 = vmatpush2.msra.mxu0 0.0
    %324 = vmatprep.subr.mxu0 0.0
    %325 = vmatpush2.msra.mxu0 0.0
    %326 = vmatprep.subr.mxu0 0.0
    %327 = vmatpush2.msra.mxu0 0.0
    %328 = vmatprep.subr.mxu0 0.0
    %329 = vmatpush2.msra.mxu0 0.0
    %330 = vmatprep.subr.mxu0 0.0
    %331 = vmatpush2.msra.mxu0 0.0
    %332 = vmatprep.subr.mxu0 0.0
    %333 = vmatpush2.msra.mxu0 0.0
    %334 = vmatprep.subr.mxu0 0.0
    %335 = vmatpush2.msra.mxu0 0.0
    %336 = vmatprep.subr.mxu0 0.0
    %337 = vmatpush2.msra.mxu0 0.0
    %338 = vmatprep.subr.mxu0 0.0
    %339 = vmatpush2.msra.mxu0 0.0
    %340 = vmatprep.subr.mxu0 0.0
    %341 = vmatpush2.msra.mxu0 0.0
    %342 = vmatprep.subr.mxu0 0.0
    %343 = vmatpush2.msra.mxu0 0.0
    %344 = vmatprep.subr.mxu0 0.0
    %345 = vmatpush2.msra.mxu0 0.0
    %346 = vmatprep.subr.mxu0 0.0
    %347 = vmatpush2.msra.mxu0 0.0
    %348 = vmatprep.mubr.f32.mxu0 0.0
    %349 = vmatmul.mubr.f32.gmra.mxu0 %v279
    %v350 = vpop.f32.mrf.mxu0
    %v351 = vadd.f32 %v276, %v350
    %v352 = vpop.f32.mrf.mxu0
    %353 = vmatprep.mubr.f32.mxu0 0.0
    %354 = vmatmul.mubr.f32.gmra.mxu0 %v282
    %v355 = vpop.f32.mrf.mxu0
    %v356 = vadd.f32 %v276, %v355
    %v357 = vpop.f32.mrf.mxu0
    %358 = vdwg.mxu0
    %v359 = vmax.f32 %v351, 0.0
    %v360 = vmax.f32 %v356, 0.0
    %v361 = vld [vmem:[%s5] sm:$0x1]
    %v362 = vld [vmem:[#allocation2] sm:$0x1]
    %364 = vset.pattern.permute.xlu0 0
    %365 = vperm.xlu0 %364, %v362
    %v366 = vpop.permute.xlu0 %365
    %v368 = vlaneseq
    %v369 = vshrl.u32 %v368, 7
    %v370 = vsub.s32 0, %v369
    %v371 = vrot.slane %v366, %v370
    %v373 = vsel %vm181, %v361, 0
    %v376 = vsel %vm181, %v359, 0
    %v379 = vsel %vm181, %v360, 0
    %381 = vmatprep.subr.mxu0 0.0
    %382 = vmatpush1.xpose.msra.mxu0 0.0
    %383 = vmatprep.subr.mxu0 0.0
    %384 = vmatpush1.xpose.msra.mxu0 0.0
    %385 = vmatprep.subr.mxu0 0.0
    %386 = vmatpush1.xpose.msra.mxu0 0.0
    %387 = vmatprep.subr.mxu0 0.0
    %388 = vmatpush1.xpose.msra.mxu0 0.0
    %389 = vmatprep.subr.mxu0 0.0
    %390 = vmatpush1.xpose.msra.mxu0 0.0
    %391 = vmatprep.subr.mxu0 0.0
    %392 = vmatpush1.xpose.msra.mxu0 0.0
    %393 = vmatprep.subr.mxu0 0.0
    %394 = vmatpush1.xpose.msra.mxu0 0.0
    %395 = vmatprep.subr.mxu0 0.0
    %396 = vmatpush1.xpose.msra.mxu0 0.0
    %397 = vmatprep.subr.mxu0 0.0
    %398 = vmatpush1.xpose.msra.mxu0 0.0
    %399 = vmatprep.subr.mxu0 0.0
    %400 = vmatpush1.xpose.msra.mxu0 0.0
    %401 = vmatprep.subr.mxu0 0.0
    %402 = vmatpush1.xpose.msra.mxu0 0.0
    %403 = vmatprep.subr.mxu0 0.0
    %404 = vmatpush1.xpose.msra.mxu0 0.0
    %405 = vmatprep.subr.mxu0 0.0
    %406 = vmatpush1.xpose.msra.mxu0 0.0
    %407 = vmatprep.subr.mxu0 0.0
    %408 = vmatpush1.xpose.msra.mxu0 0.0
    %409 = vmatprep.subr.mxu0 0.0
    %410 = vmatpush1.xpose.msra.mxu0 %v379
    %411 = vmatprep.subr.mxu0 0.0
    %412 = vmatpush1.xpose.msra.mxu0 %v376
    %413 = vmatprep.subr.mxu0 0.0
    %414 = vmatpush2.xpose.msra.mxu0 0.0
    %415 = vmatprep.subr.mxu0 0.0
    %416 = vmatpush2.xpose.msra.mxu0 0.0
    %417 = vmatprep.subr.mxu0 0.0
    %418 = vmatpush2.xpose.msra.mxu0 0.0
    %419 = vmatprep.subr.mxu0 0.0
    %420 = vmatpush2.xpose.msra.mxu0 0.0
    %421 = vmatprep.subr.mxu0 0.0
    %422 = vmatpush2.xpose.msra.mxu0 0.0
    %423 = vmatprep.subr.mxu0 0.0
    %424 = vmatpush2.xpose.msra.mxu0 0.0
    %425 = vmatprep.subr.mxu0 0.0
    %426 = vmatpush2.xpose.msra.mxu0 0.0
    %427 = vmatprep.subr.mxu0 0.0
    %428 = vmatpush2.xpose.msra.mxu0 0.0
    %429 = vmatprep.subr.mxu0 0.0
    %430 = vmatpush2.xpose.msra.mxu0 0.0
    %431 = vmatprep.subr.mxu0 0.0
    %432 = vmatpush2.xpose.msra.mxu0 0.0
    %433 = vmatprep.subr.mxu0 0.0
    %434 = vmatpush2.xpose.msra.mxu0 0.0
    %435 = vmatprep.subr.mxu0 0.0
    %436 = vmatpush2.xpose.msra.mxu0 0.0
    %437 = vmatprep.subr.mxu0 0.0
    %438 = vmatpush2.xpose.msra.mxu0 0.0
    %439 = vmatprep.subr.mxu0 0.0
    %440 = vmatpush2.xpose.msra.mxu0 0.0
    %441 = vmatprep.subr.mxu0 0.0
    %442 = vmatpush2.xpose.msra.mxu0 0.0
    %443 = vmatprep.subr.mxu0 0.0
    %444 = vmatpush2.xpose.msra.mxu0 0.0
    %445 = vmatprep.mubr.f32.mxu0 0.0
    %446 = vmatmul.mubr.f32.gmra.mxu0 %v373
    %v447 = vpop.f32.mrf.mxu0
    %v448 = vadd.f32 %v371, %v447
    %v449 = vpop.f32.mrf.mxu0
    %450 = vdwg.mxu0
    %vm451 = vcmask 122880
    %452 = vst.msk [vmem:[#allocation9] sm:$0x1] %vm451, %v448
    // Predicated region
    $region42: #{tpu_custom_call.1} parent=1 // pred_check
      _
    $region43: #{tpu_custom_call.1} parent=1 // pred_check_branch
      %454 = sbr.rel (0) target = $region45
    $region44: #{tpu_custom_call.1} parent=1 // pred_region
      %s456 = ssub.s32 16, 16
      %457 = vsyncadd [#allocation5], %s456
      %s459 = sshll.u32 [#allocation9], 4
      %s460 = int_to_ptr.vmem [resolvable:$true] %s459
      %462 = dma.vmem_to_hbm [thread:$0]  %s460, 16, %s7, [#allocation5]
    $region45: #{tpu_custom_call.1} parent=1 // pred_fallthru
      _
    // Predicated region
    $region46: #{tpu_custom_call.1} parent=1 // pred_check
      _
    $region47: #{tpu_custom_call.1} parent=1 // pred_check_branch
      %464 = sbr.rel (0) target = $region49
    $region48: #{tpu_custom_call.1} parent=1 // pred_region
      %465 = dma.done [#allocation5], 16
    $region49: #{tpu_custom_call.1} parent=1 // pred_fallthru
      _
    %466 = vsyncpa [#allocation4], 1
    %467 = vsyncpa [#allocation7], 1
    %468 = vsyncpa [#allocation5], 1

</llo_original>
